<compile_context>
chip_gen: v7x
topology: tpu7x:2x2x1
jax: 0.10.0
libtpu: 0.0.40
codegen_flags: <defaults>
</compile_context>

<pallas_src>
import functools
import math

import jax
import jax.numpy as jnp
from jax.experimental import pallas as pl
from jax.experimental.pallas import tpu as pltpu


def _rmsnorm_kernel(x_ref, w_ref, o_ref, *, eps: float, f32_scale: bool):
    # x_ref: (tile_rows, dim), w_ref: (1, dim), o_ref: (tile_rows, dim)
    x = x_ref[...]
    xf = x.astype(jnp.float32)                               # x.float()
    ms = jnp.mean(xf * xf, axis=-1, keepdims=True)           # pow(2).mean(-1)
    inv = jax.lax.rsqrt(ms + eps)                            # rsqrt(. + eps)
    if f32_scale:
        # All-f32 scale path (v5e, or f32 inputs where the two paths agree).
        o_ref[...] = (xf * inv * w_ref[...].astype(jnp.float32)).astype(o_ref.dtype)
    else:
        # torch-exact: `_norm(x.float()).type_as(x) * weight` — cast to x.dtype
        # BEFORE the weight multiply; scale pass stays in the narrow dtype.
        normed = (xf * inv).astype(x.dtype)
        o_ref[...] = normed.astype(o_ref.dtype) * w_ref[...].astype(o_ref.dtype)


def _round_up(n: int, m: int) -> int:
    return ((n + m - 1) // m) * m


@functools.lru_cache(maxsize=1)
def _chip_budget():
    """(target_block_bytes, vmem_limit_bytes, is_v5e) for the local TPU."""
    vmem_bytes = 128 * 1024 * 1024
    is_v5e = False
    try:
        vmem_bytes = int(pltpu.get_tpu_info().vmem_capacity_bytes)
    except Exception:
        pass
    try:
        kind = jax.devices()[0].device_kind.lower()
        is_v5e = ("v5 lite" in kind) or ("v5e" in kind) or ("v5litepod" in kind)
    except Exception:
        pass
    if vmem_bytes <= 64 * 1024 * 1024:
        # v7x-class: 64 MiB VMEM per TensorCore -> smaller blocks, tighter cap.
        return 3 * 1024 * 1024, 30 * 1024 * 1024, is_v5e
    # v5e / v6e-class: 128 MiB VMEM -> bigger blocks are free.
    return 8 * 1024 * 1024, 64 * 1024 * 1024, is_v5e


def _pick_tile_rows(rows: int, dim: int, in_itemsize: int, out_itemsize: int,
                    pack: int, target_block_bytes: int) -> int:
    """Largest row tile whose (input + output) block bytes fit the budget,
    aligned to the input dtype's sublane pack factor, capped so the grid has
    at least ~4 pipeline steps when rows allow."""
    per_row_bytes = dim * (in_itemsize + out_itemsize)
    tile = max(pack, target_block_bytes // max(1, per_row_bytes))
    tile = (tile // pack) * pack
    if rows >= 4 * pack:
        # Guarantee >= ~4 grid steps so prefetch / writeback actually overlap
        # (and both v7x TensorCores get work when the grid is core-sharded).
        tile = min(tile, _round_up(-(-rows // 4), pack))
    tile = min(tile, _round_up(rows, pack))
    return max(tile, pack)


def rmsnorm(x: jax.Array, weight: jax.Array, eps: float = 1e-6,
            tile_rows: int | None = None) -> jax.Array:
    """RMSNorm over the last dim of x, scaled by `weight` (shape (dim,))."""
    orig_shape = x.shape
    dim = orig_shape[-1]
    rows = math.prod(orig_shape[:-1]) if len(orig_shape) > 1 else 1

    # torch: `_norm(x.float()).type_as(x) * self.weight` promotes to the wider
    # of (x.dtype, weight.dtype).
    out_dtype = jnp.result_type(x.dtype, weight.dtype)
    in_itemsize = jnp.dtype(x.dtype).itemsize
    out_itemsize = jnp.dtype(out_dtype).itemsize
    pack = max(8, 32 // max(1, in_itemsize))  # 8 f32 / 16 bf16 / 32 int8

    target_block_bytes, vmem_limit_bytes, is_v5e = _chip_budget()

    if tile_rows is None:
        tile_rows = _pick_tile_rows(rows, dim, in_itemsize, out_itemsize,
                                    pack, target_block_bytes)
    else:
        tile_rows = max(pack, (int(tile_rows) // pack) * pack)
        tile_rows = min(tile_rows, _round_up(rows, pack))

    # v5e's VPU/EUP have no native bf16 -> keep the scale pass in f32 there.
    # For f32 inputs both paths are identical.
    f32_scale = is_v5e or x.dtype == jnp.float32

    x2d = x.reshape(rows, dim)
    w2d = weight.reshape(1, dim)

    # cdiv grid: Pallas pads reads / masks writes of the ragged last tile, so
    # we never fall back to a single whole-array block.
    # NOTE: dim stays the full (last) extent of the array so non-128-multiple
    # dims remain legal; llama dims are lane-dense (multiples of 128) so the
    # output stores stay unmasked `vst`.
    grid = (pl.cdiv(rows, tile_rows),)

    out = pl.pallas_call(
        functools.partial(_rmsnorm_kernel, eps=float(eps), f32_scale=f32_scale),
        out_shape=jax.ShapeDtypeStruct((rows, dim), out_dtype),
        grid=grid,
        in_specs=[
            pl.BlockSpec((tile_rows, dim), lambda i: (i, 0)),
            # Weight block index is constant -> DMA'd once; its pipeline buffer
            # is just dim*itemsize bytes (negligible next to the row tiles).
            pl.BlockSpec((1, dim), lambda i: (0, 0)),
        ],
        out_specs=pl.BlockSpec((tile_rows, dim), lambda i: (i, 0)),
        compiler_params=pltpu.CompilerParams(
            # "parallel" lets v7x shard row tiles across its 2 TensorCores;
            # ~neutral on v5e/v6e.
            dimension_semantics=("parallel",),
            vmem_limit_bytes=vmem_limit_bytes,
        ),
    )(x2d, w2d)

    return out.reshape(orig_shape[:-1] + (dim,))


def _rmsnorm_ref(x, weight, eps):
    # Mirrors torch exactly: _norm(x.float()).type_as(x) * weight.
    xf = x.astype(jnp.float32)
    inv = jax.lax.rsqrt(jnp.mean(xf * xf, axis=-1, keepdims=True) + eps)
    normed = (xf * inv).astype(x.dtype)
    out_dtype = jnp.result_type(x.dtype, weight.dtype)
    return normed.astype(out_dtype) * weight.astype(out_dtype)


if __name__ == "__main__":
    eps = 1e-6
    key = jax.random.PRNGKey(0)
    k1, k2, k3 = jax.random.split(key, 3)

    # Case 1: small llama-like shape, lane-dense dim (multiple of 128), f32.
    batch, seq, dim = 2, 8, 128
    x = jax.random.normal(k1, (batch, seq, dim), dtype=jnp.float32)
    weight = jnp.ones((dim,), dtype=jnp.float32)   # nn.Parameter(torch.ones(dim))
    out = jax.block_until_ready(rmsnorm(x, weight, eps=eps))
    assert out.shape == x.shape and out.dtype == x.dtype
    assert jnp.allclose(out, _rmsnorm_ref(x, weight, eps), atol=1e-5, rtol=1e-5)

    # Case 2: ragged row count (rows=18, not a tile multiple) exercises the
    # cdiv grid / masked last tile, with a non-trivial learned weight.
    b2, s2, d2 = 3, 6, 128
    x2 = jax.random.normal(k2, (b2, s2, d2), dtype=jnp.float32)
    w2 = jnp.linspace(0.5, 1.5, d2, dtype=jnp.float32)
    out2 = jax.block_until_ready(rmsnorm(x2, w2, eps=eps, tile_rows=8))
    assert out2.shape == x2.shape
    assert jnp.allclose(out2, _rmsnorm_ref(x2, w2, eps), atol=1e-5, rtol=1e-5)

    # Case 3: bf16 activations + bf16 weight exercise the low-precision scale
    # path (on v6e/v7x; v5e falls back to the f32 path, same within tolerance).
    b3, s3, d3 = 4, 16, 256
    x3 = jax.random.normal(k3, (b3, s3, d3), dtype=jnp.float32).astype(jnp.bfloat16)
    w3 = jnp.linspace(0.8, 1.2, d3, dtype=jnp.float32).astype(jnp.bfloat16)
    out3 = jax.block_until_ready(rmsnorm(x3, w3, eps=eps))
    assert out3.shape == x3.shape and out3.dtype == jnp.bfloat16
    assert jnp.allclose(out3.astype(jnp.float32),
                        _rmsnorm_ref(x3, w3, eps).astype(jnp.float32),
                        atol=2e-2, rtol=2e-2)

    print("KERNEL_OK")
</pallas_src>

<mosaic_0001>
module attributes {stable_mosaic.version = 11 : i64} {
  func.func @_rmsnorm_kernel(%arg0: i32, %arg1: memref<16x128xf32, #tpu.memory_space<vmem>>, %arg2: memref<1x128xf32, #tpu.memory_space<vmem>>, %arg3: memref<16x128xf32, #tpu.memory_space<vmem>>) attributes {dimension_semantics = [#tpu.dimension_semantics<parallel>], iteration_bounds = array<i64: 1>, scalar_prefetch = 0 : i64, scratch_operands = 0 : i64, tpu.core_type = #tpu.core_type<tc>, window_params = [{transform_indices = @transform_0, window_bounds = array<i64: 16, 128>}, {pipeline_mode = #tpu.pipeline_mode<synchronous>, transform_indices = @transform_1, window_bounds = array<i64: 1, 128>}, {transform_indices = @transform_2, window_bounds = array<i64: 16, 128>}]} {
    %c0 = arith.constant 0 : index
    %c0_0 = arith.constant 0 : index
    %0 = vector.load %arg1[%c0, %c0_0] : memref<16x128xf32, #tpu.memory_space<vmem>>, vector<16x128xf32>
    %1 = arith.mulf %0, %0 : vector<16x128xf32>
    %cst = arith.constant dense<0.000000e+00> : vector<16xf32>
    %2 = vector.multi_reduction <add>, %1, %cst [1] : vector<16x128xf32> to vector<16xf32>
    %3 = vector.shape_cast %2 : vector<16xf32> to vector<16x1xf32>
    %cst_1 = arith.constant 1.280000e+02 : f32
    %4 = vector.broadcast %cst_1 : f32 to vector<16x1xf32>
    %5 = arith.divf %3, %4 : vector<16x1xf32>
    %cst_2 = arith.constant 9.99999997E-7 : f32
    %6 = vector.broadcast %cst_2 : f32 to vector<16x1xf32>
    %7 = arith.addf %5, %6 : vector<16x1xf32>
    %8 = math.rsqrt %7 : vector<16x1xf32>
    %9 = vector.broadcast %8 : vector<16x1xf32> to vector<16x128xf32>
    %10 = arith.mulf %0, %9 : vector<16x128xf32>
    %c0_3 = arith.constant 0 : index
    %c0_4 = arith.constant 0 : index
    %11 = vector.load %arg2[%c0_3, %c0_4] : memref<1x128xf32, #tpu.memory_space<vmem>>, vector<1x128xf32>
    %12 = vector.broadcast %11 : vector<1x128xf32> to vector<16x128xf32>
    %13 = arith.mulf %10, %12 : vector<16x128xf32>
    %c0_5 = arith.constant 0 : index
    %c0_6 = arith.constant 0 : index
    %14 = vector.load %arg3[%c0_5, %c0_6] : memref<16x128xf32, #tpu.memory_space<vmem>>, vector<16x128xf32>
    tpu.vector_store %arg3[%c0_5, %c0_6], %13 {strides = array<i32>} : memref<16x128xf32, #tpu.memory_space<vmem>>, vector<16x128xf32>,
    return
  }
  func.func @transform_0(%arg0: i32) -> (i32, i32) {
    %c0_i32 = arith.constant 0 : i32
    %c0_i32_0 = arith.constant 0 : i32
    return %arg0, %c0_i32 : i32, i32
  }
  func.func @transform_1(%arg0: i32) -> (i32, i32) {
    %c0_i32 = arith.constant 0 : i32
    %c0_i32_0 = arith.constant 0 : i32
    %c0_i32_1 = arith.constant 0 : i32
    return %c0_i32, %c0_i32_0 : i32, i32
  }
  func.func @transform_2(%arg0: i32) -> (i32, i32) {
    %c0_i32 = arith.constant 0 : i32
    %c0_i32_0 = arith.constant 0 : i32
    return %arg0, %c0_i32 : i32, i32
  }
}

</mosaic_0001>

<llo_original>
// kernel: tpu_custom_call.1
$region0: #{tpu_custom_call.1}
  #allocation0 [shape = 'u32[]', space=smem, size = 0x4, offset = 0x4, fixed_abs, tag = 'smem constant byte address 0x4 - core index']
  #allocation1 [shape = 'u32[144,128]{1,0:T(1,128)}', space=vmem, size = 0x12000, scoped, tag = 'internal scratch']
  %s0 = inlined_call_operand.hbm [shape: f32[16,128], index: 0, kind: input, shape index: {}]
  %s1 = inlined_call_operand.hbm [shape: f32[1,128], index: 1, kind: input, shape index: {}]
  %s2 = inlined_call_operand.hbm [shape: f32[16,128], index: 2, kind: output, shape index: {}]
  %s3 = sld [smem:[#allocation0]]
  $region26: #{tpu_custom_call.1} parent=0
    _
  %s5 = ssub.s32 1, %s3
  %s6 = scalar_select 0, %s5, %s3
  $region1: #{tpu_custom_call.1} parent=0
    #allocation2 [shape = 'u8[8192]{0}', space=vmem, size = 0x2000, scoped, tag = 'input window, operand 0, single buffered']
    #allocation3 [shape = 's32[1]{0}', space=sflag, size = 0x4, scoped, tag = 'scoped memory for tpu_custom_call.1']
    #allocation4 [shape = 's32[1]{0}', space=sflag, size = 0x4, scoped, tag = 'scoped memory for tpu_custom_call.1']
    #allocation5 [shape = 'u8[512]{0}', space=vmem, size = 0x400, scoped, tag = 'input window, operand 1, single buffered']
    #allocation6 [shape = 's32[1]{0}', space=sflag, size = 0x4, scoped, tag = 'scoped memory for tpu_custom_call.1']
    #allocation7 [shape = 'u8[8192]{0}', space=vmem, size = 0x2000, scoped, tag = 'output window, operand 0, single buffered']
    %7 = vsyncpa [#allocation3], 0
    %8 = vsyncpa [#allocation6], 0
    %9 = vsyncpa [#allocation4], 0
    // Predicated region
    $region2: #{tpu_custom_call.1} parent=1 // pred_check
      _
    $region3: #{tpu_custom_call.1} parent=1 // pred_check_branch
      %11 = sbr.rel (0) target = $region5
    $region4: #{tpu_custom_call.1} parent=1 // pred_region
      %s13 = ssub.s32 256, 256
      %14 = vsyncadd [#allocation3], %s13
      %s15 = sshll.u32 [#allocation2], 4
      %s16 = int_to_ptr.vmem [resolvable:$true] %s15
      %21 = dma.hbm_to_vmem [thread:$0]  %s0, 256, %s16, [#allocation3], 128, 128, 8
    $region5: #{tpu_custom_call.1} parent=1 // pred_fallthru
      _
    // Predicated region
    $region6: #{tpu_custom_call.1} parent=1 // pred_check
      _
    $region7: #{tpu_custom_call.1} parent=1 // pred_check_branch
      %23 = sbr.rel (0) target = $region9
    $region8: #{tpu_custom_call.1} parent=1 // pred_region
      %s25 = ssub.s32 16, 16
      %26 = vsyncadd [#allocation6], %s25
      %s28 = sshll.u32 [#allocation5], 4
      %s29 = int_to_ptr.vmem [resolvable:$true] %s28
      %31 = dma.hbm_to_vmem [thread:$0]  %s1, 16, %s29, [#allocation6]
    $region9: #{tpu_custom_call.1} parent=1 // pred_fallthru
      _
    // Predicated region
    $region10: #{tpu_custom_call.1} parent=1 // pred_check
      _
    $region11: #{tpu_custom_call.1} parent=1 // pred_check_branch
      %33 = sbr.rel (0) target = $region13
    $region12: #{tpu_custom_call.1} parent=1 // pred_region
      %34 = dma.done [#allocation3], 256
    $region13: #{tpu_custom_call.1} parent=1 // pred_fallthru
      _
    // Predicated region
    $region14: #{tpu_custom_call.1} parent=1 // pred_check
      _
    $region15: #{tpu_custom_call.1} parent=1 // pred_check_branch
      %36 = sbr.rel (0) target = $region17
    $region16: #{tpu_custom_call.1} parent=1 // pred_region
      %37 = dma.done [#allocation6], 16
    $region17: #{tpu_custom_call.1} parent=1 // pred_fallthru
      _
    %v38 = vld [vmem:[#allocation2] sm:$0xff]
    %v39 = vld [vmem:[#allocation2 + $0x8] sm:$0xff]
    %v40 = vmul.f32 %v38, %v38
    %v41 = vmul.f32 %v39, %v39
    %42 = vadd.xlane.f32.xlu0 %v40
    %v43 = vpop.xlane.xlu0 %42
    %44 = vadd.xlane.f32.xlu0 %v41
    %v45 = vpop.xlane.xlu0 %44
    %v46 = vrcp.pop 128.0
    %v47 = vmul.f32 %v43, %v46
    %v48 = vmul.f32 %v45, %v46
    %v49 = vadd.f32 %v47, 1e-06
    %v50 = vadd.f32 %v48, 1e-06
    %v51 = vrsqrt.pop %v49
    %v52 = vrsqrt.pop %v50
    %v53 = vmul.f32 %v38, %v51
    %v54 = vmul.f32 %v39, %v52
    %v55 = vld [vmem:[#allocation5] sm:$0x1]
    %v57 = vlaneseq
    %v58 = vshrl.u32 %v57, 7
    %v59 = vsub.s32 0, %v58
    %v60 = vrot.slane %v55, %v59
    %v62 = vmul.f32 %v53, %v60
    %v63 = vmul.f32 %v54, %v60
    %64 = vst [vmem:[#allocation7] sm:$0xff] %v62
    %65 = vst [vmem:[#allocation7 + $0x8] sm:$0xff] %v63
    // Predicated region
    $region18: #{tpu_custom_call.1} parent=1 // pred_check
      _
    $region19: #{tpu_custom_call.1} parent=1 // pred_check_branch
      %67 = sbr.rel (0) target = $region21
    $region20: #{tpu_custom_call.1} parent=1 // pred_region
      %s69 = ssub.s32 256, 256
      %70 = vsyncadd [#allocation4], %s69
      %s71 = sshll.u32 [#allocation7], 4
      %s72 = int_to_ptr.vmem [resolvable:$true] %s71
      %77 = dma.vmem_to_hbm [thread:$0]  %s72, 256, %s2, [#allocation4], 128, 128, 8
    $region21: #{tpu_custom_call.1} parent=1 // pred_fallthru
      _
    // Predicated region
    $region22: #{tpu_custom_call.1} parent=1 // pred_check
      _
    $region23: #{tpu_custom_call.1} parent=1 // pred_check_branch
      %79 = sbr.rel (0) target = $region25
    $region24: #{tpu_custom_call.1} parent=1 // pred_region
      %80 = dma.done [#allocation4], 256
    $region25: #{tpu_custom_call.1} parent=1 // pred_fallthru
      _
    %81 = vsyncpa [#allocation3], 1
    %82 = vsyncpa [#allocation6], 1
    %83 = vsyncpa [#allocation4], 1

</llo_original>
